<compile_context>
chip_gen: v5e
topology: v5e:2x2
jax: 0.10.0
libtpu: 0.0.40
codegen_flags: <defaults>
</compile_context>

<pallas_src>
import jax
import jax.numpy as jnp
from jax.experimental import pallas as pl
from jax.experimental.pallas import tpu as pltpu


_LANES = 128                    # lane width of the flat slab view
_DEFAULT_MAX_BLOCK_ROWS = 2048  # 2048 x 128 f32 = 1 MiB per input per buffer


def _round_up(x, m):
    return (x + m - 1) // m * m


def _min_sublanes(dtype):
    # Min second-to-last tile: (8,128) f32, (16,128) bf16, (32,128) int8/fp8.
    return {4: 8, 2: 16, 1: 32}.get(jnp.dtype(dtype).itemsize, 8)


def _default_num_splits():
    """2 on dual-TensorCore chips (v7x), 1 on single-TC chips (v5e/v6e)."""
    try:
        kind = jax.devices()[0].device_kind.lower().replace(" ", "")
    except Exception:
        return 1
    return 2 if ("v7" in kind or "tpu7" in kind) else 1


def _make_mse_kernel(num_preds, valid_rows, block_rows, lanes, inv_n):
    """Builds the fused MSE kernel over a 2-D (rows, lanes) view.

    refs = (*pred_refs, tgt_ref, out_ref, *acc_refs)
    grid = (num_splits, steps): axis 0 'parallel' (v7x dual TC), axis 1 the
    sequential reduction over row blocks.  acc_refs are (8, lanes) f32 strips;
    the single cross-lane reduce + mean scaling happen once per split and are
    written straight to the SMEM output.
    """
    groups = block_rows // 8

    def kernel(*refs):
        pred_refs = refs[:num_preds]
        tgt_ref = refs[num_preds]
        out_ref = refs[num_preds + 1]
        acc_refs = refs[num_preds + 2:]

        i = pl.program_id(1)
        steps = pl.num_programs(1)

        @pl.when(i == 0)
        def _():
            for acc in acc_refs:
                acc[...] = jnp.zeros_like(acc)

        # The final block of the last split may overrun the real array; Pallas
        # hands us garbage rows there, so zero their contribution in-kernel
        # (this replaces the old wrapper-side jnp.pad entirely).
        row0 = (pl.program_id(0) * steps + i) * block_rows
        rows_left = valid_rows - row0
        row_ids = jax.lax.broadcasted_iota(jnp.int32, (block_rows, lanes), 0)
        valid = row_ids < rows_left

        tgt = tgt_ref[...].astype(jnp.float32)
        for p_ref, acc in zip(pred_refs, acc_refs):
            d = jnp.where(valid, p_ref[...].astype(jnp.float32) - tgt, 0.0)
            sq = d * d
            # Block-shaped -> (8, lanes) strip: pure VPU vreg adds, no XLU.
            acc[...] += sq.reshape(groups, 8, lanes).sum(axis=0)

        @pl.when(i == steps - 1)
        def _():
            for j, acc in enumerate(acc_refs):
                out_ref[0, j] = jnp.sum(acc[...]) * inv_n

    return kernel


def _mse_means(preds, tgt, *, max_block_rows=None, num_splits=None):
    """Mean squared error of each prediction vs tgt in one fused Pallas pass.

    Returns a list of scalar float32 means, one per prediction.
    """
    num_preds = len(preds)
    assert num_preds >= 1
    for p in preds:
        assert p.shape == tgt.shape, (p.shape, tgt.shape)

    total = int(tgt.size)
    arrs_in = list(preds) + [tgt]

    # Metadata-only 2-D view (no pad, no HBM copy): lane-dense when possible,
    # otherwise the array's natural (rows, last_dim) shape.
    if total % _LANES == 0:
        rows, lanes = total // _LANES, _LANES
    else:
        lanes = tgt.shape[-1] if tgt.ndim >= 2 else 1
        rows = total // lanes
    arrs = [a.reshape(rows, lanes) for a in arrs_in]

    sub = max(_min_sublanes(a.dtype) for a in arrs)
    if max_block_rows is None:
        max_block_rows = _DEFAULT_MAX_BLOCK_ROWS
    block_rows = min(_round_up(max_block_rows, sub), _round_up(rows, sub))
    nblocks = pl.cdiv(rows, block_rows)

    if num_splits is None:
        num_splits = _default_num_splits()
    # Keep both halves balanced and the grid free of fully-OOB blocks.
    if num_splits > 1 and nblocks % num_splits != 0:
        num_splits = 1
    steps = nblocks // num_splits

    kernel = _make_mse_kernel(num_preds, rows, block_rows, lanes,
                              1.0 / float(total))

    in_spec = pl.BlockSpec((block_rows, lanes), lambda s, i: (s * steps + i, 0))
    out_spec = pl.BlockSpec((1, num_preds), lambda s, i: (s, 0),
                            memory_space=pltpu.MemorySpace.SMEM)

    bytes_accessed = sum(int(a.size) * a.dtype.itemsize for a in arrs)
    cost = pl.CostEstimate(flops=4 * num_preds * total, transcendentals=0,
                           bytes_accessed=bytes_accessed)

    block_bytes = sum(block_rows * lanes * a.dtype.itemsize for a in arrs)
    vmem_limit = int(min(64 * 1024 * 1024,
                         max(32 * 1024 * 1024, 2 * block_bytes + 4 * 1024 * 1024)))

    out = pl.pallas_call(
        kernel,
        out_shape=jax.ShapeDtypeStruct((num_splits, num_preds), jnp.float32),
        grid_spec=pltpu.PrefetchScalarGridSpec(
            num_scalar_prefetch=0,
            grid=(num_splits, steps),
            in_specs=[in_spec] * (num_preds + 1),
            out_specs=out_spec,
            scratch_shapes=[pltpu.VMEM((8, lanes), jnp.float32)] * num_preds,
        ),
        compiler_params=pltpu.CompilerParams(
            dimension_semantics=("parallel", "arbitrary"),
            vmem_limit_bytes=vmem_limit,
        ),
        cost_estimate=cost,
    )(*arrs)

    per_pred = out[0] if num_splits == 1 else out.sum(axis=0)
    return [per_pred[j] for j in range(num_preds)]


def pynerf_loss(predictions, targets, *, max_block_rows=None, num_splits=None):
    """Pallas implementation of PyNeRFLoss.forward.

    predictions: dict with optional 'rgb' and/or 'rgb_coarse' (each shaped like
                 targets['rgb'], e.g. [N, 3]).
    targets:     dict with 'rgb'.
    Returns a dict of scalar float32 losses.
    """
    losses = {}
    if "rgb" in targets:
        tgt = targets["rgb"]
        name_by_key = {"rgb": "color_loss", "rgb_coarse": "color_loss_coarse"}
        keys = [k for k in ("rgb", "rgb_coarse") if k in predictions]
        if keys:
            means = _mse_means([predictions[k] for k in keys], tgt,
                               max_block_rows=max_block_rows,
                               num_splits=num_splits)
            for k, m in zip(keys, means):
                losses[name_by_key[k]] = m

    total = jnp.float32(0.0)
    for v in losses.values():
        total = total + v
    losses["total_loss"] = total
    return losses


# ----------------------------------------------------------------------------
# Self-test
# ----------------------------------------------------------------------------
def _reference_loss(predictions, targets):
    losses = {}
    tgt = targets["rgb"].astype(jnp.float32)
    if "rgb" in predictions:
        losses["color_loss"] = jnp.mean(
            (predictions["rgb"].astype(jnp.float32) - tgt) ** 2)
    if "rgb_coarse" in predictions:
        losses["color_loss_coarse"] = jnp.mean(
            (predictions["rgb_coarse"].astype(jnp.float32) - tgt) ** 2)
    total = jnp.float32(0.0)
    for v in losses.values():
        total = total + v
    losses["total_loss"] = total
    return losses


def _check(predictions, targets, atol, **kwargs):
    got = pynerf_loss(predictions, targets, **kwargs)
    got = jax.tree_util.tree_map(jax.block_until_ready, got)
    want = _reference_loss(predictions, targets)
    assert set(got) == set(want), (sorted(got), sorted(want))
    for k in want:
        assert jnp.allclose(got[k], want[k], rtol=1e-4, atol=atol), (
            k, float(got[k]), float(want[k]))


if __name__ == "__main__":
    key = jax.random.PRNGKey(0)
    k1, k2, k3 = jax.random.split(key, 3)

    def make(n, dtype):
        p = jax.random.uniform(k1, (n, 3), dtype=jnp.float32).astype(dtype)
        c = jax.random.uniform(k2, (n, 3), dtype=jnp.float32).astype(dtype)
        t = jax.random.uniform(k3, (n, 3), dtype=jnp.float32).astype(dtype)
        return p, c, t

    # 1) Typical ray batch: lane-dense (T % 128 == 0) single-block path, both preds.
    p, c, t = make(4096, jnp.float32)
    _check({"rgb": p, "rgb_coarse": c}, {"rgb": t}, atol=1e-6)

    # 2) Misaligned ray count + a single prediction (2-input / 1-accumulator
    #    kernel variant, natural (N, 3) view).
    p, c, t = make(1000, jnp.float32)
    _check({"rgb": p}, {"rgb": t}, atol=1e-6)
    _check({"rgb_coarse": c}, {"rgb": t}, atol=1e-6)

    # 3) bf16 inputs: 16-sublane tile rounding, multi-step reduction with a
    #    ragged (masked) final block, native-dtype HBM streaming.
    p, c, t = make(5000, jnp.bfloat16)
    _check({"rgb": p, "rgb_coarse": c}, {"rgb": t}, atol=1e-5, max_block_rows=512)

    # 4) Explicit 2-way split axis (v7x dual-TensorCore path; runs sequentially
    #    and stays correct on single-TC chips).
    p, c, t = make(8192, jnp.float32)
    _check({"rgb": p, "rgb_coarse": c}, {"rgb": t}, atol=1e-6,
           max_block_rows=48, num_splits=2)

    print("KERNEL_OK")
</pallas_src>

<mosaic_0001>
module attributes {stable_mosaic.version = 11 : i64} {
  func.func @kernel(%arg0: i32, %arg1: i32, %arg2: memref<96x128xf32, #tpu.memory_space<vmem>>, %arg3: memref<96x128xf32, #tpu.memory_space<vmem>>, %arg4: memref<96x128xf32, #tpu.memory_space<vmem>>, %arg5: memref<1x2xf32, #tpu.memory_space<smem>>, %arg6: memref<8x128xf32, #tpu.memory_space<vmem>>, %arg7: memref<8x128xf32, #tpu.memory_space<vmem>>) attributes {dimension_semantics = [#tpu.dimension_semantics<parallel>, #tpu.dimension_semantics<arbitrary>], iteration_bounds = array<i64: 1, 1>, scalar_prefetch = 0 : i64, scratch_operands = 2 : i64, tpu.core_type = #tpu.core_type<tc>, window_params = [{transform_indices = @transform_0, window_bounds = array<i64: 96, 128>}, {transform_indices = @transform_1, window_bounds = array<i64: 96, 128>}, {transform_indices = @transform_2, window_bounds = array<i64: 96, 128>}, {transform_indices = @transform_3, window_bounds = array<i64: 1, 2>}]} {
    %c0_i32 = arith.constant 0 : i32
    %0 = arith.cmpi eq, %arg1, %c0_i32 : i32
    %1 = arith.extui %0 : i1 to i32
    %c0_i32_0 = arith.constant 0 : i32
    %2 = arith.cmpi ne, %1, %c0_i32_0 : i32
    scf.if %2 {
      %cst_20 = arith.constant 0.000000e+00 : f32
      %34 = vector.broadcast %cst_20 : f32 to vector<8x128xf32>
      %c0_21 = arith.constant 0 : index
      %c0_22 = arith.constant 0 : index
      %35 = vector.load %arg6[%c0_21, %c0_22] : memref<8x128xf32, #tpu.memory_space<vmem>>, vector<8x128xf32>
      tpu.vector_store %arg6[%c0_21, %c0_22], %34 {strides = array<i32>} : memref<8x128xf32, #tpu.memory_space<vmem>>, vector<8x128xf32>,
      %cst_23 = arith.constant 0.000000e+00 : f32
      %36 = vector.broadcast %cst_23 : f32 to vector<8x128xf32>
      %c0_24 = arith.constant 0 : index
      %c0_25 = arith.constant 0 : index
      %37 = vector.load %arg7[%c0_24, %c0_25] : memref<8x128xf32, #tpu.memory_space<vmem>>, vector<8x128xf32>
      tpu.vector_store %arg7[%c0_24, %c0_25], %36 {strides = array<i32>} : memref<8x128xf32, #tpu.memory_space<vmem>>, vector<8x128xf32>,
    } else {
    }
    %c1_i32 = arith.constant 1 : i32
    %3 = arith.muli %arg0, %c1_i32 : i32
    %4 = arith.addi %3, %arg1 : i32
    %c96_i32 = arith.constant 96 : i32
    %5 = arith.muli %4, %c96_i32 : i32
    %c96_i32_1 = arith.constant 96 : i32
    %6 = arith.subi %c96_i32_1, %5 : i32
    %7 = tpu.iota {dimensions = array<i32: 0>} : vector<96x128xi32>
    %8 = vector.broadcast %6 : i32 to vector<96x128xi32>
    %9 = arith.cmpi slt, %7, %8 : vector<96x128xi32>
    %c0 = arith.constant 0 : index
    %c0_2 = arith.constant 0 : index
    %10 = vector.load %arg4[%c0, %c0_2] : memref<96x128xf32, #tpu.memory_space<vmem>>, vector<96x128xf32>
    %c0_3 = arith.constant 0 : index
    %c0_4 = arith.constant 0 : index
    %11 = vector.load %arg2[%c0_3, %c0_4] : memref<96x128xf32, #tpu.memory_space<vmem>>, vector<96x128xf32>
    %12 = arith.subf %11, %10 : vector<96x128xf32>
    %cst = arith.constant 0.000000e+00 : f32
    %13 = vector.broadcast %cst : f32 to vector<96x128xf32>
    %14 = arith.select %9, %12, %13 : vector<96x128xi1>, vector<96x128xf32>
    %15 = arith.mulf %14, %14 : vector<96x128xf32>
    %c0_5 = arith.constant 0 : index
    %c0_6 = arith.constant 0 : index
    %16 = vector.load %arg6[%c0_5, %c0_6] : memref<8x128xf32, #tpu.memory_space<vmem>>, vector<8x128xf32>
    %17 = vector.shape_cast %15 : vector<96x128xf32> to vector<12x8x128xf32>
    %cst_7 = arith.constant dense<0.000000e+00> : vector<8x128xf32>
    %18 = vector.multi_reduction <add>, %17, %cst_7 [0] : vector<12x8x128xf32> to vector<8x128xf32>
    %19 = arith.addf %16, %18 : vector<8x128xf32>
    %c0_8 = arith.constant 0 : index
    %c0_9 = arith.constant 0 : index
    %20 = vector.load %arg6[%c0_8, %c0_9] : memref<8x128xf32, #tpu.memory_space<vmem>>, vector<8x128xf32>
    tpu.vector_store %arg6[%c0_8, %c0_9], %19 {strides = array<i32>} : memref<8x128xf32, #tpu.memory_space<vmem>>, vector<8x128xf32>,
    %c0_10 = arith.constant 0 : index
    %c0_11 = arith.constant 0 : index
    %21 = vector.load %arg3[%c0_10, %c0_11] : memref<96x128xf32, #tpu.memory_space<vmem>>, vector<96x128xf32>
    %22 = arith.subf %21, %10 : vector<96x128xf32>
    %cst_12 = arith.constant 0.000000e+00 : f32
    %23 = vector.broadcast %cst_12 : f32 to vector<96x128xf32>
    %24 = arith.select %9, %22, %23 : vector<96x128xi1>, vector<96x128xf32>
    %25 = arith.mulf %24, %24 : vector<96x128xf32>
    %c0_13 = arith.constant 0 : index
    %c0_14 = arith.constant 0 : index
    %26 = vector.load %arg7[%c0_13, %c0_14] : memref<8x128xf32, #tpu.memory_space<vmem>>, vector<8x128xf32>
    %27 = vector.shape_cast %25 : vector<96x128xf32> to vector<12x8x128xf32>
    %cst_15 = arith.constant dense<0.000000e+00> : vector<8x128xf32>
    %28 = vector.multi_reduction <add>, %27, %cst_15 [0] : vector<12x8x128xf32> to vector<8x128xf32>
    %29 = arith.addf %26, %28 : vector<8x128xf32>
    %c0_16 = arith.constant 0 : index
    %c0_17 = arith.constant 0 : index
    %30 = vector.load %arg7[%c0_16, %c0_17] : memref<8x128xf32, #tpu.memory_space<vmem>>, vector<8x128xf32>
    tpu.vector_store %arg7[%c0_16, %c0_17], %29 {strides = array<i32>} : memref<8x128xf32, #tpu.memory_space<vmem>>, vector<8x128xf32>,
    %c0_i32_18 = arith.constant 0 : i32
    %31 = arith.cmpi eq, %arg1, %c0_i32_18 : i32
    %32 = arith.extui %31 : i1 to i32
    %c0_i32_19 = arith.constant 0 : i32
    %33 = arith.cmpi ne, %32, %c0_i32_19 : i32
    scf.if %33 {
      %c0_20 = arith.constant 0 : index
      %c0_21 = arith.constant 0 : index
      %34 = vector.load %arg6[%c0_20, %c0_21] : memref<8x128xf32, #tpu.memory_space<vmem>>, vector<8x128xf32>
      %35 = vector.shape_cast %34 : vector<8x128xf32> to vector<1x8x128xf32>
      %cst_22 = arith.constant dense<0.000000e+00> : vector<1xf32>
      %36 = vector.multi_reduction <add>, %35, %cst_22 [1, 2] : vector<1x8x128xf32> to vector<1xf32>
      %37 = vector.shape_cast %36 : vector<1xf32> to vector<1x1x1xf32>
      %38 = vector.extract %37[0, 0, 0] : f32 from vector<1x1x1xf32>
      %cst_23 = arith.constant 8.13802107E-5 : f32
      %39 = arith.mulf %38, %cst_23 : f32
      %c0_24 = arith.constant 0 : index
      %c0_25 = arith.constant 0 : index
      %40 = memref.load %arg5[%c0_24, %c0_25] : memref<1x2xf32, #tpu.memory_space<smem>>
      memref.store %39, %arg5[%c0_24, %c0_25] : memref<1x2xf32, #tpu.memory_space<smem>>
      %c0_26 = arith.constant 0 : index
      %c0_27 = arith.constant 0 : index
      %41 = vector.load %arg7[%c0_26, %c0_27] : memref<8x128xf32, #tpu.memory_space<vmem>>, vector<8x128xf32>
      %42 = vector.shape_cast %41 : vector<8x128xf32> to vector<1x8x128xf32>
      %cst_28 = arith.constant dense<0.000000e+00> : vector<1xf32>
      %43 = vector.multi_reduction <add>, %42, %cst_28 [1, 2] : vector<1x8x128xf32> to vector<1xf32>
      %44 = vector.shape_cast %43 : vector<1xf32> to vector<1x1x1xf32>
      %45 = vector.extract %44[0, 0, 0] : f32 from vector<1x1x1xf32>
      %cst_29 = arith.constant 8.13802107E-5 : f32
      %46 = arith.mulf %45, %cst_29 : f32
      %c0_30 = arith.constant 0 : index
      %c1 = arith.constant 1 : index
      %47 = memref.load %arg5[%c0_30, %c1] : memref<1x2xf32, #tpu.memory_space<smem>>
      memref.store %46, %arg5[%c0_30, %c1] : memref<1x2xf32, #tpu.memory_space<smem>>
    } else {
    }
    return
  }
  func.func @transform_0(%arg0: i32, %arg1: i32) -> (i32, i32) {
    %c1_i32 = arith.constant 1 : i32
    %0 = arith.muli %arg0, %c1_i32 : i32
    %1 = arith.addi %0, %arg1 : i32
    %c0_i32 = arith.constant 0 : i32
    %c0_i32_0 = arith.constant 0 : i32
    return %1, %c0_i32 : i32, i32
  }
  func.func @transform_1(%arg0: i32, %arg1: i32) -> (i32, i32) {
    %c1_i32 = arith.constant 1 : i32
    %0 = arith.muli %arg0, %c1_i32 : i32
    %1 = arith.addi %0, %arg1 : i32
    %c0_i32 = arith.constant 0 : i32
    %c0_i32_0 = arith.constant 0 : i32
    return %1, %c0_i32 : i32, i32
  }
  func.func @transform_2(%arg0: i32, %arg1: i32) -> (i32, i32) {
    %c1_i32 = arith.constant 1 : i32
    %0 = arith.muli %arg0, %c1_i32 : i32
    %1 = arith.addi %0, %arg1 : i32
    %c0_i32 = arith.constant 0 : i32
    %c0_i32_0 = arith.constant 0 : i32
    return %1, %c0_i32 : i32, i32
  }
  func.func @transform_3(%arg0: i32, %arg1: i32) -> (i32, i32) {
    %c0_i32 = arith.constant 0 : i32
    %c0_i32_0 = arith.constant 0 : i32
    return %arg0, %c0_i32 : i32, i32
  }
}

</mosaic_0001>

<llo_original>
// kernel: tpu_custom_call.1
$region0: #{tpu_custom_call.1}
  #allocation0 [shape = 'u32[]', space=smem, size = 0x4, offset = 0x4, fixed_abs, tag = 'smem constant byte address 0x4 - core index']
  #allocation1 [shape = 'u32[72,128]{1,0:T(1,128)}', space=vmem, size = 0x9000, scoped, tag = 'internal scratch']
  #allocation2 [shape = 'f32[8,128]{1,0:T(8,128)}', space=vmem, size = 0x1000, scoped, tag = 'scratch operand']
  #allocation3 [shape = 'f32[8,128]{1,0:T(8,128)}', space=vmem, size = 0x1000, scoped, tag = 'scratch operand']
  %s0 = inlined_call_operand.hbm [shape: f32[96,128], index: 0, kind: input, shape index: {}]
  %s1 = inlined_call_operand.hbm [shape: f32[96,128], index: 1, kind: input, shape index: {}]
  %s2 = inlined_call_operand.hbm [shape: f32[96,128], index: 2, kind: input, shape index: {}]
  %s3 = inlined_call_operand.hbm [shape: f32[1,2], index: 3, kind: output, shape index: {}]
  %s4 = sld [smem:[#allocation0]]
  $region42: #{tpu_custom_call.1} parent=0
    _
  %s6 = ssub.s32 1, %s4
  %s7 = scalar_select 0, %s6, %s4
  $region1: #{tpu_custom_call.1} parent=0
    #allocation4 [shape = 'u8[49152]{0}', space=vmem, size = 0xc000, scoped, tag = 'input window, operand 0, single buffered']
    #allocation5 [shape = 's32[1]{0}', space=sflag, size = 0x4, scoped, tag = 'scoped memory for tpu_custom_call.1']
    #allocation6 [shape = 's32[1]{0}', space=sflag, size = 0x4, scoped, tag = 'scoped memory for tpu_custom_call.1']
    #allocation7 [shape = 'u8[49152]{0}', space=vmem, size = 0xc000, scoped, tag = 'input window, operand 1, single buffered']
    #allocation8 [shape = 's32[1]{0}', space=sflag, size = 0x4, scoped, tag = 'scoped memory for tpu_custom_call.1']
    #allocation9 [shape = 'u8[49152]{0}', space=vmem, size = 0xc000, scoped, tag = 'input window, operand 2, single buffered']
    #allocation10 [shape = 'u8[512]{0}', space=smem, size = 0x200, scoped, tag = 'output window, operand 0, single buffered']
    %8 = vsyncpa [#allocation5], 0
    %9 = vsyncpa [#allocation8], 0
    %10 = vsyncpa [#allocation6], 0
    // Predicated region
    $region2: #{tpu_custom_call.1} parent=1 // pred_check
      _
    $region3: #{tpu_custom_call.1} parent=1 // pred_check_branch
      %12 = sbr.rel (0) target = $region5
    $region4: #{tpu_custom_call.1} parent=1 // pred_region
      %s13 = sadd.s32 0, 0
      %s14 = smul.u32 12, %s13
      %16 = vsyncadd [#allocation5], 0
      %s17 = smul.addr %s14, 8
      %s18 = scalar_lea.hbm %s0, %s17
      %s19 = sshll.u32 %s18, 4
      %s20 = int_to_ptr.hbm [resolvable:$true] %s19
      %s21 = sshll.u32 [#allocation4], 4
      %s22 = int_to_ptr.vmem [resolvable:$true] %s21
      %27 = dma.hbm_to_vmem [thread:$0]  %s20, 1536, %s22, [#allocation5], 128, 128, 8
    $region5: #{tpu_custom_call.1} parent=1 // pred_fallthru
      _
    // Predicated region
    $region6: #{tpu_custom_call.1} parent=1 // pred_check
      _
    $region7: #{tpu_custom_call.1} parent=1 // pred_check_branch
      %29 = sbr.rel (0) target = $region9
    $region8: #{tpu_custom_call.1} parent=1 // pred_region
      %s30 = sadd.s32 0, 0
      %s31 = smul.u32 12, %s30
      %33 = vsyncadd [#allocation8], 0
      %s34 = smul.addr %s31, 8
      %s35 = scalar_lea.hbm %s1, %s34
      %s36 = sshll.u32 %s35, 4
      %s37 = int_to_ptr.hbm [resolvable:$true] %s36
      %s38 = sshll.u32 [#allocation7], 4
      %s39 = int_to_ptr.vmem [resolvable:$true] %s38
      %44 = dma.hbm_to_vmem [thread:$0]  %s37, 1536, %s39, [#allocation8], 128, 128, 8
    $region9: #{tpu_custom_call.1} parent=1 // pred_fallthru
      _
    // Predicated region
    $region10: #{tpu_custom_call.1} parent=1 // pred_check
      _
    $region11: #{tpu_custom_call.1} parent=1 // pred_check_branch
      %46 = sbr.rel (0) target = $region13
    $region12: #{tpu_custom_call.1} parent=1 // pred_region
      %s47 = sadd.s32 0, 0
      %s48 = smul.u32 12, %s47
      %50 = vsyncadd [#allocation8], 0
      %s51 = smul.addr %s48, 8
      %s52 = scalar_lea.hbm %s2, %s51
      %s53 = sshll.u32 %s52, 4
      %s54 = int_to_ptr.hbm [resolvable:$true] %s53
      %s55 = sshll.u32 [#allocation9], 4
      %s56 = int_to_ptr.vmem [resolvable:$true] %s55
      %61 = dma.hbm_to_vmem [thread:$0]  %s54, 1536, %s56, [#allocation8], 128, 128, 8
    $region13: #{tpu_custom_call.1} parent=1 // pred_fallthru
      _
    // Predicated region
    $region14: #{tpu_custom_call.1} parent=1 // pred_check
      _
    $region15: #{tpu_custom_call.1} parent=1 // pred_check_branch
      %63 = sbr.rel (0) target = $region17
    $region16: #{tpu_custom_call.1} parent=1 // pred_region
      %65 = dma.done [#allocation5], 1536
    $region17: #{tpu_custom_call.1} parent=1 // pred_fallthru
      _
    // Predicated region
    $region18: #{tpu_custom_call.1} parent=1 // pred_check
      _
    $region19: #{tpu_custom_call.1} parent=1 // pred_check_branch
      %67 = sbr.rel (0) target = $region21
    $region20: #{tpu_custom_call.1} parent=1 // pred_region
      %69 = dma.done [#allocation8], 1536
    $region21: #{tpu_custom_call.1} parent=1 // pred_fallthru
      _
    // Predicated region
    $region22: #{tpu_custom_call.1} parent=1 // pred_check
      _
    $region23: #{tpu_custom_call.1} parent=1 // pred_check_branch
      %71 = sbr.rel (0) target = $region25
    $region24: #{tpu_custom_call.1} parent=1 // pred_region
      %73 = dma.done [#allocation8], 1536
    $region25: #{tpu_custom_call.1} parent=1 // pred_fallthru
      _
    %s74 = sadd.s32 0, 0
    %s75 = smul.u32 12, %s74
    %s76 = sadd.s32 0, 0
    %s77 = smul.u32 12, %s76
    %s78 = sadd.s32 0, 0
    %s79 = smul.u32 12, %s78
    %p80 = scmp.eq.s32.totalorder 0, 0
    // Predicated region
    $region26: #{tpu_custom_call.1} parent=1 // pred_check
      %p81 = pneg %p80
    $region27: #{tpu_custom_call.1} parent=1 // pred_check_branch
      %83 = sbr.rel (%p81) target = $region29
    $region28: #{tpu_custom_call.1} parent=1 // pred_region
      %84 = vst [vmem:[#allocation2] sm:$0xff] 0.0
      %85 = vst [vmem:[#allocation3] sm:$0xff] 0.0
    $region29: #{tpu_custom_call.1} parent=1 // pred_fallthru
      _
    %s86 = sadd.s32 0, 0
    %s87 = smul.u32 %s86, 96
    %s88 = ssub.s32 96, %s87
    %v89 = vlaneseq
    %v90 = vshrl.u32 %v89, 7
    %v91 = vadd.s32 %v90, 8
    %v92 = vadd.s32 %v90, 16
    %v93 = vadd.s32 %v90, 24
    %v94 = vadd.s32 %v90, 32
    %v95 = vadd.s32 %v90, 40
    %v96 = vadd.s32 %v90, 48
    %v97 = vadd.s32 %v90, 56
    %v98 = vadd.s32 %v90, 64
    %v99 = vadd.s32 %v90, 72
    %v100 = vadd.s32 %v90, 80
    %v101 = vadd.s32 %v90, 88
    %v102 = vstv %s88
    %vm103 = vcmp.lt.s32.totalorder %v90, %v102
    %vm104 = vcmp.lt.s32.totalorder %v91, %v102
    %vm105 = vcmp.lt.s32.totalorder %v92, %v102
    %vm106 = vcmp.lt.s32.totalorder %v93, %v102
    %vm107 = vcmp.lt.s32.totalorder %v94, %v102
    %vm108 = vcmp.lt.s32.totalorder %v95, %v102
    %vm109 = vcmp.lt.s32.totalorder %v96, %v102
    %vm110 = vcmp.lt.s32.totalorder %v97, %v102
    %vm111 = vcmp.lt.s32.totalorder %v98, %v102
    %vm112 = vcmp.lt.s32.totalorder %v99, %v102
    %vm113 = vcmp.lt.s32.totalorder %v100, %v102
    %vm114 = vcmp.lt.s32.totalorder %v101, %v102
    %v115 = vld [vmem:[#allocation9] sm:$0xff]
    %v116 = vld [vmem:[#allocation9 + $0x8] sm:$0xff]
    %v117 = vld [vmem:[#allocation9 + $0x10] sm:$0xff]
    %v118 = vld [vmem:[#allocation9 + $0x18] sm:$0xff]
    %v119 = vld [vmem:[#allocation9 + $0x20] sm:$0xff]
    %v120 = vld [vmem:[#allocation9 + $0x28] sm:$0xff]
    %v121 = vld [vmem:[#allocation9 + $0x30] sm:$0xff]
    %v122 = vld [vmem:[#allocation9 + $0x38] sm:$0xff]
    %v123 = vld [vmem:[#allocation9 + $0x40] sm:$0xff]
    %v124 = vld [vmem:[#allocation9 + $0x48] sm:$0xff]
    %v125 = vld [vmem:[#allocation9 + $0x50] sm:$0xff]
    %v126 = vld [vmem:[#allocation9 + $0x58] sm:$0xff]
    %v127 = vld [vmem:[#allocation4] sm:$0xff]
    %v128 = vld [vmem:[#allocation4 + $0x8] sm:$0xff]
    %v129 = vld [vmem:[#allocation4 + $0x10] sm:$0xff]
    %v130 = vld [vmem:[#allocation4 + $0x18] sm:$0xff]
    %v131 = vld [vmem:[#allocation4 + $0x20] sm:$0xff]
    %v132 = vld [vmem:[#allocation4 + $0x28] sm:$0xff]
    %v133 = vld [vmem:[#allocation4 + $0x30] sm:$0xff]
    %v134 = vld [vmem:[#allocation4 + $0x38] sm:$0xff]
    %v135 = vld [vmem:[#allocation4 + $0x40] sm:$0xff]
    %v136 = vld [vmem:[#allocation4 + $0x48] sm:$0xff]
    %v137 = vld [vmem:[#allocation4 + $0x50] sm:$0xff]
    %v138 = vld [vmem:[#allocation4 + $0x58] sm:$0xff]
    %v139 = vsub.f32 %v127, %v115
    %v140 = vsub.f32 %v128, %v116
    %v141 = vsub.f32 %v129, %v117
    %v142 = vsub.f32 %v130, %v118
    %v143 = vsub.f32 %v131, %v119
    %v144 = vsub.f32 %v132, %v120
    %v145 = vsub.f32 %v133, %v121
    %v146 = vsub.f32 %v134, %v122
    %v147 = vsub.f32 %v135, %v123
    %v148 = vsub.f32 %v136, %v124
    %v149 = vsub.f32 %v137, %v125
    %v150 = vsub.f32 %v138, %v126
    %v151 = vsel %vm103, %v139, 0.0
    %v152 = vsel %vm104, %v140, 0.0
    %v153 = vsel %vm105, %v141, 0.0
    %v154 = vsel %vm106, %v142, 0.0
    %v155 = vsel %vm107, %v143, 0.0
    %v156 = vsel %vm108, %v144, 0.0
    %v157 = vsel %vm109, %v145, 0.0
    %v158 = vsel %vm110, %v146, 0.0
    %v159 = vsel %vm111, %v147, 0.0
    %v160 = vsel %vm112, %v148, 0.0
    %v161 = vsel %vm113, %v149, 0.0
    %v162 = vsel %vm114, %v150, 0.0
    %v163 = vmul.f32 %v151, %v151
    %v164 = vmul.f32 %v152, %v152
    %v165 = vmul.f32 %v153, %v153
    %v166 = vmul.f32 %v154, %v154
    %v167 = vmul.f32 %v155, %v155
    %v168 = vmul.f32 %v156, %v156
    %v169 = vmul.f32 %v157, %v157
    %v170 = vmul.f32 %v158, %v158
    %v171 = vmul.f32 %v159, %v159
    %v172 = vmul.f32 %v160, %v160
    %v173 = vmul.f32 %v161, %v161
    %v174 = vmul.f32 %v162, %v162
    %v175 = vld [vmem:[#allocation2] sm:$0xff]
    %v176 = vadd.f32 %v163, %v164
    %v177 = vadd.f32 %v176, %v165
    %v178 = vadd.f32 %v177, %v166
    %v179 = vadd.f32 %v178, %v167
    %v180 = vadd.f32 %v179, %v168
    %v181 = vadd.f32 %v180, %v169
    %v182 = vadd.f32 %v181, %v170
    %v183 = vadd.f32 %v182, %v171
    %v184 = vadd.f32 %v183, %v172
    %v185 = vadd.f32 %v184, %v173
    %v186 = vadd.f32 %v185, %v174
    %v187 = vadd.f32 %v175, %v186
    %188 = vst [vmem:[#allocation2] sm:$0xff] %v187
    %v189 = vld [vmem:[#allocation7] sm:$0xff]
    %v190 = vld [vmem:[#allocation7 + $0x8] sm:$0xff]
    %v191 = vld [vmem:[#allocation7 + $0x10] sm:$0xff]
    %v192 = vld [vmem:[#allocation7 + $0x18] sm:$0xff]
    %v193 = vld [vmem:[#allocation7 + $0x20] sm:$0xff]
    %v194 = vld [vmem:[#allocation7 + $0x28] sm:$0xff]
    %v195 = vld [vmem:[#allocation7 + $0x30] sm:$0xff]
    %v196 = vld [vmem:[#allocation7 + $0x38] sm:$0xff]
    %v197 = vld [vmem:[#allocation7 + $0x40] sm:$0xff]
    %v198 = vld [vmem:[#allocation7 + $0x48] sm:$0xff]
    %v199 = vld [vmem:[#allocation7 + $0x50] sm:$0xff]
    %v200 = vld [vmem:[#allocation7 + $0x58] sm:$0xff]
    %v201 = vsub.f32 %v189, %v115
    %v202 = vsub.f32 %v190, %v116
    %v203 = vsub.f32 %v191, %v117
    %v204 = vsub.f32 %v192, %v118
    %v205 = vsub.f32 %v193, %v119
    %v206 = vsub.f32 %v194, %v120
    %v207 = vsub.f32 %v195, %v121
    %v208 = vsub.f32 %v196, %v122
    %v209 = vsub.f32 %v197, %v123
    %v210 = vsub.f32 %v198, %v124
    %v211 = vsub.f32 %v199, %v125
    %v212 = vsub.f32 %v200, %v126
    %v213 = vsel %vm103, %v201, 0.0
    %v214 = vsel %vm104, %v202, 0.0
    %v215 = vsel %vm105, %v203, 0.0
    %v216 = vsel %vm106, %v204, 0.0
    %v217 = vsel %vm107, %v205, 0.0
    %v218 = vsel %vm108, %v206, 0.0
    %v219 = vsel %vm109, %v207, 0.0
    %v220 = vsel %vm110, %v208, 0.0
    %v221 = vsel %vm111, %v209, 0.0
    %v222 = vsel %vm112, %v210, 0.0
    %v223 = vsel %vm113, %v211, 0.0
    %v224 = vsel %vm114, %v212, 0.0
    %v225 = vmul.f32 %v213, %v213
    %v226 = vmul.f32 %v214, %v214
    %v227 = vmul.f32 %v215, %v215
    %v228 = vmul.f32 %v216, %v216
    %v229 = vmul.f32 %v217, %v217
    %v230 = vmul.f32 %v218, %v218
    %v231 = vmul.f32 %v219, %v219
    %v232 = vmul.f32 %v220, %v220
    %v233 = vmul.f32 %v221, %v221
    %v234 = vmul.f32 %v222, %v222
    %v235 = vmul.f32 %v223, %v223
    %v236 = vmul.f32 %v224, %v224
    %v237 = vld [vmem:[#allocation3] sm:$0xff]
    %v238 = vadd.f32 %v225, %v226
    %v239 = vadd.f32 %v238, %v227
    %v240 = vadd.f32 %v239, %v228
    %v241 = vadd.f32 %v240, %v229
    %v242 = vadd.f32 %v241, %v230
    %v243 = vadd.f32 %v242, %v231
    %v244 = vadd.f32 %v243, %v232
    %v245 = vadd.f32 %v244, %v233
    %v246 = vadd.f32 %v245, %v234
    %v247 = vadd.f32 %v246, %v235
    %v248 = vadd.f32 %v247, %v236
    %v249 = vadd.f32 %v237, %v248
    %250 = vst [vmem:[#allocation3] sm:$0xff] %v249
    // Predicated region
    $region30: #{tpu_custom_call.1} parent=1 // pred_check
      %p251 = pneg %p80
    $region31: #{tpu_custom_call.1} parent=1 // pred_check_branch
      %253 = sbr.rel (%p251) target = $region33
    $region32: #{tpu_custom_call.1} parent=1 // pred_region
      %v254 = vld [vmem:[#allocation2] sm:$0xff]
      %255 = vadd.xlane.f32.xlu0 %v254
      %v256 = vpop.xlane.xlu0 %255
      %v257 = vrot.slane %v256, 4
      %v258 = vadd.f32 %v256, %v257
      %v259 = vrot.slane %v258, 2
      %v260 = vadd.f32 %v258, %v259
      %v261 = vrot.slane %v260, 1
      %v262 = vadd.f32 %v260, %v261
      %s263 = vtos %v262
      %s264 = smul.f32 %s263, 8.138021e-05
      %s265 = scalar_lea.smem [#allocation10], 0
      %266 = sst [smem:[%s265]] %s264
      %v267 = vld [vmem:[#allocation3] sm:$0xff]
      %268 = vadd.xlane.f32.xlu0 %v267
      %v269 = vpop.xlane.xlu0 %268
      %v270 = vrot.slane %v269, 4
      %v271 = vadd.f32 %v269, %v270
      %v272 = vrot.slane %v271, 2
      %v273 = vadd.f32 %v271, %v272
      %v274 = vrot.slane %v273, 1
      %v275 = vadd.f32 %v273, %v274
      %s276 = vtos %v275
      %s277 = smul.f32 %s276, 8.138021e-05
      %s278 = scalar_lea.smem [#allocation10], 1
      %279 = sst [smem:[%s278]] %s277
    $region33: #{tpu_custom_call.1} parent=1 // pred_fallthru
      _
    // Predicated region
    $region34: #{tpu_custom_call.1} parent=1 // pred_check
      _
    $region35: #{tpu_custom_call.1} parent=1 // pred_check_branch
      %281 = sbr.rel (0) target = $region37
    $region36: #{tpu_custom_call.1} parent=1 // pred_region
      %283 = vsyncadd [#allocation6], 0
      %s285 = sshll.u32 %s3, 4
      %s286 = int_to_ptr.hbm [resolvable:$true] %s285
      %288 = dma.smem_to_hbm [#allocation10], 16, %s286, [#allocation6]
    $region37: #{tpu_custom_call.1} parent=1 // pred_fallthru
      _
    // Predicated region
    $region38: #{tpu_custom_call.1} parent=1 // pred_check
      _
    $region39: #{tpu_custom_call.1} parent=1 // pred_check_branch
      %290 = sbr.rel (0) target = $region41
    $region40: #{tpu_custom_call.1} parent=1 // pred_region
      %292 = dma.done [#allocation6], 16
    $region41: #{tpu_custom_call.1} parent=1 // pred_fallthru
      _
    %293 = sfence
    %294 = vsyncpa [#allocation5], 1
    %295 = vsyncpa [#allocation8], 1
    %296 = vsyncpa [#allocation6], 1

</llo_original>
